<compile_context>
chip_gen: v5e
topology: v5e:2x2
jax: 0.10.0
libtpu: 0.0.40
codegen_flags: <defaults>
</compile_context>

<pallas_src>
import functools

import jax
import jax.numpy as jnp
from jax.experimental import pallas as pl
from jax.experimental.pallas import tpu as pltpu

LEAKY_SLOPE = 0.01              # nn.LeakyReLU default negative_slope
BN_EPS = 1e-5                   # nn.BatchNorm1d default eps


def _round_up(x: int, m: int) -> int:
    return ((x + m - 1) // m) * m


def _hw_params():
    """Per-generation (vmem_limit_bytes, tile_m_max, tile_k_max)."""
    try:
        vmem_cap = int(pltpu.get_tpu_info().vmem_capacity_bytes)
    except Exception:
        vmem_cap = 64 * 1024 * 1024            # conservative fallback (v7x per-TC VMEM)
    if vmem_cap >= 100 * 1024 * 1024:          # v5e / v6e: 128 MiB VMEM
        return 96 * 1024 * 1024, 1024, 4096
    return 40 * 1024 * 1024, 512, 2048         # v7x: 64 MiB VMEM per TensorCore


# ---------------------------------------------------------------------------
# Pass 1: h = LeakyReLU(x @ W^T + b) (bf16 writeback) + per-(M-tile, channel)
#         partial sum / sum-of-squares for the BatchNorm statistics.
# grid = (m_tiles, n_tiles, k_tiles): M outer ("parallel"), N inner, K innermost.
# ---------------------------------------------------------------------------
def _matmul_stats_kernel(x_ref, w_ref, b_ref, h_ref, ssum_ref, ssq_ref, *scratch,
                         single_k: bool, mask_last_tile: bool, rows_valid_last: int):
    m_idx = pl.program_id(0)

    # (tile_m, K) x (tile_n, K) -> (tile_m, tile_n): contract K with K (i.e. x @ W^T)
    # keeping the weight in its PyTorch (out_features, in_features) layout.
    # bf16 operands, f32 accumulation on the MXU.
    partial = jax.lax.dot_general(
        x_ref[...], w_ref[...],
        dimension_numbers=(((1,), (1,)), ((), ())),
        preferred_element_type=jnp.float32,
    )

    def epilogue(acc):
        h32 = acc + b_ref[...]                                # bias, (1, tile_n) broadcast
        h32 = jnp.where(h32 >= 0.0, h32, LEAKY_SLOPE * h32)   # LeakyReLU in f32
        h_ref[...] = h32.astype(h_ref.dtype)                  # bf16 HBM writeback

        def write_stats(hv):
            ssum_ref[...] = jnp.sum(hv, axis=0, keepdims=True)[None]
            ssq_ref[...] = jnp.sum(hv * hv, axis=0, keepdims=True)[None]

        if mask_last_tile:
            # Only the last M tile contains zero-padded rows; mask them there only.
            @pl.when(m_idx == pl.num_programs(0) - 1)
            def _():
                row = jax.lax.broadcasted_iota(jnp.int32, h32.shape, 0)
                write_stats(jnp.where(row < rows_valid_last, h32, 0.0))

            @pl.when(m_idx != pl.num_programs(0) - 1)
            def _():
                write_stats(h32)
        else:
            write_stats(h32)

    if single_k:
        epilogue(partial)                      # common path: whole K fits in one block
    else:
        acc_ref = scratch[0]                   # f32 VMEM accumulator across K tiles
        k_idx = pl.program_id(2)

        @pl.when(k_idx == 0)
        def _():
            acc_ref[...] = partial

        @pl.when(k_idx != 0)
        def _():
            acc_ref[...] += partial

        @pl.when(k_idx == pl.num_programs(2) - 1)
        def _():
            epilogue(acc_ref[...])


# ---------------------------------------------------------------------------
# Pass 2: out = h * scale + shift   (BatchNorm folded into per-channel vectors)
# ---------------------------------------------------------------------------
def _scale_shift_kernel(h_ref, scale_ref, shift_ref, o_ref):
    o_ref[...] = h_ref[...].astype(jnp.float32) * scale_ref[...] + shift_ref[...]


@jax.jit
def linear_layer_forward(x, w, b, gamma, beta):
    """x: (B, L, D_in) f32; w: (D_out, D_in) f32 (PyTorch layout); b/gamma/beta: (D_out,).

    Returns (B, L, D_out) f32 matching the PyTorch LinearLayer forward
    (Linear -> LeakyReLU -> BatchNorm1d training-mode per-channel normalization).
    """
    B, L, d_in = x.shape
    d_out, d_in_w = w.shape
    assert d_in_w == d_in
    M = B * L

    vmem_limit, tile_m_max, tile_k_max = _hw_params()

    # --- lane-dense padded geometry ----------------------------------------------------
    k_pad = _round_up(d_in, 128)
    tile_k = min(tile_k_max, k_pad)            # K only tiled for very wide input_dim
    k_pad = _round_up(k_pad, tile_k)
    k_tiles = k_pad // tile_k

    # 256-wide N tiles feed the 256x256 MXUs; fall back to 128 (less channel padding,
    # v5e-friendly) when d_out doesn't round to a multiple of 256.
    tile_n = 256 if _round_up(d_out, 128) % 256 == 0 else 128
    n_pad = _round_up(d_out, tile_n)
    n_tiles = n_pad // tile_n

    tile_m = min(tile_m_max, _round_up(M, 16))
    m_pad = _round_up(M, tile_m)
    m_tiles = m_pad // tile_m
    mask_last_tile = m_pad != M
    rows_valid_last = M - (m_tiles - 1) * tile_m

    x2d = x.reshape(M, d_in)
    if (m_pad, k_pad) != (M, d_in):
        x2d = jnp.pad(x2d, ((0, m_pad - M), (0, k_pad - d_in)))
    w_p = w if (n_pad, k_pad) == (d_out, d_in) else jnp.pad(
        w, ((0, n_pad - d_out), (0, k_pad - d_in)))
    b_p = jnp.pad(b, (0, n_pad - d_out)).reshape(1, n_pad).astype(jnp.float32)
    g_p = jnp.pad(gamma, (0, n_pad - d_out)).reshape(1, n_pad).astype(jnp.float32)
    be_p = jnp.pad(beta, (0, n_pad - d_out)).reshape(1, n_pad).astype(jnp.float32)

    # bf16 MXU operands (halves x/w HBM bytes, ~2x MXU throughput on v6e/v7x); the
    # accumulation and whole epilogue stay f32 so the BN statistics are unaffected.
    # TODO(synk): accept bf16 activations (or use allow_input_fusion) to avoid
    # materializing this padded f32->bf16 copy of x in HBM before the kernel starts.
    x_mx = x2d.astype(jnp.bfloat16)
    w_mx = w_p.astype(jnp.bfloat16)

    # --- pass 1: matmul + bias + LeakyReLU + per-M-tile partial stats -------------------
    kernel1 = functools.partial(
        _matmul_stats_kernel,
        single_k=(k_tiles == 1),
        mask_last_tile=mask_last_tile,
        rows_valid_last=rows_valid_last,
    )
    cost1 = pl.CostEstimate(
        flops=2 * m_pad * k_pad * n_pad + 6 * m_pad * n_pad,
        transcendentals=0,
        bytes_accessed=(m_pad * k_pad * 2                 # x read once (resident across N)
                        + m_tiles * n_pad * k_pad * 2     # small weight re-streamed per M tile
                        + m_pad * n_pad * 2               # h write (bf16)
                        + 2 * m_tiles * n_pad * 4         # partial stats
                        + n_pad * 4),                     # bias
    )
    h_pad, ssum_parts, ssq_parts = pl.pallas_call(
        kernel1,
        out_shape=(
            jax.ShapeDtypeStruct((m_pad, n_pad), jnp.bfloat16),      # h (bf16 intermediate)
            jax.ShapeDtypeStruct((m_tiles, 1, n_pad), jnp.float32),  # per-M-tile sum
            jax.ShapeDtypeStruct((m_tiles, 1, n_pad), jnp.float32),  # per-M-tile sum of sq
        ),
        grid_spec=pltpu.PrefetchScalarGridSpec(
            num_scalar_prefetch=0,
            grid=(m_tiles, n_tiles, k_tiles),      # M outer (parallel), N inner, K innermost
            in_specs=[
                pl.BlockSpec((tile_m, tile_k), lambda m, n, k: (m, k)),  # x: DMA'd once per m
                pl.BlockSpec((tile_n, tile_k), lambda m, n, k: (n, k)),  # w (PyTorch layout)
                pl.BlockSpec((1, tile_n), lambda m, n, k: (0, n)),       # bias
            ],
            out_specs=[
                pl.BlockSpec((tile_m, tile_n), lambda m, n, k: (m, n)),   # h
                pl.BlockSpec((1, 1, tile_n), lambda m, n, k: (m, 0, n)),  # partial sum
                pl.BlockSpec((1, 1, tile_n), lambda m, n, k: (m, 0, n)),  # partial sum of sq
            ],
            scratch_shapes=(() if k_tiles == 1
                            else (pltpu.VMEM((tile_m, tile_n), jnp.float32),)),
        ),
        compiler_params=pltpu.CompilerParams(
            dimension_semantics=("parallel", "arbitrary", "arbitrary"),
            vmem_limit_bytes=vmem_limit,
        ),
        cost_estimate=cost1,
    )(x_mx, w_mx, b_p)

    # --- fold BatchNorm into per-channel scale/shift (tiny (1, n_pad) jnp ops) -----------
    inv_count = 1.0 / float(M)
    mean = jnp.sum(ssum_parts, axis=0) * inv_count                       # (1, n_pad)
    var = jnp.maximum(jnp.sum(ssq_parts, axis=0) * inv_count - mean * mean, 0.0)
    scale = g_p * jax.lax.rsqrt(var + BN_EPS)
    shift = be_p - mean * scale

    # --- pass 2: out = h * scale + shift (full-channel-width, 1-D grid over M) ----------
    tile_m2 = tile_m
    while tile_m2 % 32 == 0 and 2 * tile_m2 * n_pad * 6 > 16 * 1024 * 1024:
        tile_m2 //= 2                            # shrink rows only for very wide n_pad
    m_tiles2 = m_pad // tile_m2
    cost2 = pl.CostEstimate(
        flops=2 * m_pad * n_pad,
        transcendentals=0,
        bytes_accessed=m_pad * n_pad * 6 + 2 * n_pad * 4,
    )
    # TODO(synk): alias h to the output (input_output_aliases) if a bf16 output were
    # acceptable; kept f32 here to match the PyTorch module's dtype.
    out_pad = pl.pallas_call(
        _scale_shift_kernel,
        out_shape=jax.ShapeDtypeStruct((m_pad, n_pad), jnp.float32),
        grid_spec=pltpu.PrefetchScalarGridSpec(
            num_scalar_prefetch=0,
            grid=(m_tiles2,),
            in_specs=[
                pl.BlockSpec((tile_m2, n_pad), lambda m: (m, 0)),  # h (bf16)
                pl.BlockSpec((1, n_pad), lambda m: (0, 0)),        # scale
                pl.BlockSpec((1, n_pad), lambda m: (0, 0)),        # shift
            ],
            out_specs=pl.BlockSpec((tile_m2, n_pad), lambda m: (m, 0)),
        ),
        compiler_params=pltpu.CompilerParams(
            dimension_semantics=("parallel",),
            vmem_limit_bytes=vmem_limit,
        ),
        cost_estimate=cost2,
    )(h_pad, scale, shift)

    # Drop padded rows / channels; restore (B, L, D_out).
    return out_pad[:M, :d_out].reshape(B, L, d_out)


if __name__ == "__main__":
    # M = B*L = 18 exercises the padded-row masking path; D_OUT = 300 exercises the inner
    # N loop (3 channel tiles) with the activation tile resident across it.
    B, L, D_IN, D_OUT = 2, 9, 32, 300

    key = jax.random.PRNGKey(0)
    kx, kw, kb = jax.random.split(key, 3)

    x = jax.random.normal(kx, (B, L, D_IN), dtype=jnp.float32)
    bound = 1.0 / (D_IN ** 0.5)                      # nn.Linear default init bound
    w = jax.random.uniform(kw, (D_OUT, D_IN), jnp.float32, -bound, bound)
    b = jax.random.uniform(kb, (D_OUT,), jnp.float32, -bound, bound)
    gamma = jnp.ones((D_OUT,), jnp.float32)          # BatchNorm1d default weight
    beta = jnp.zeros((D_OUT,), jnp.float32)          # BatchNorm1d default bias
    # TODO(synk): BatchNorm1d's running_mean/running_var buffer updates (training-state
    # side effect) are not reproduced; only the normalized forward output is.

    out = jax.block_until_ready(linear_layer_forward(x, w, b, gamma, beta))
    assert out.shape == (B, L, D_OUT)

    # Reference 1: mirrors the kernel's numerics (bf16 MXU operands, f32 accumulation and
    # statistics, bf16 h intermediate, folded scale/shift epilogue).
    xb = x.reshape(-1, D_IN).astype(jnp.bfloat16)
    wb = w.astype(jnp.bfloat16)
    h = jax.lax.dot_general(xb, wb, (((1,), (1,)), ((), ())),
                            preferred_element_type=jnp.float32) + b
    h = jnp.where(h >= 0, h, LEAKY_SLOPE * h)
    mu = h.mean(axis=0, keepdims=True)
    var = jnp.maximum((h * h).mean(axis=0, keepdims=True) - mu * mu, 0.0)
    scale = gamma * jax.lax.rsqrt(var + BN_EPS)
    shift = beta - mu * scale
    hb = h.astype(jnp.bfloat16).astype(jnp.float32)
    ref = (hb * scale + shift).reshape(B, L, D_OUT)
    assert jnp.allclose(out, ref, atol=1e-3, rtol=1e-3), "mismatch vs bf16-path reference"

    # Reference 2: pure-f32 PyTorch semantics. Loose sanity check only — the intentional
    # bf16 down-cast of the MXU operands / h intermediate dominates the difference.
    hf = x.reshape(-1, D_IN) @ w.T + b
    hf = jnp.where(hf >= 0, hf, LEAKY_SLOPE * hf)
    mu = hf.mean(axis=0, keepdims=True)
    var = ((hf - mu) ** 2).mean(axis=0, keepdims=True)
    ref32 = (gamma * (hf - mu) / jnp.sqrt(var + BN_EPS) + beta).reshape(B, L, D_OUT)
    assert jnp.allclose(out, ref32, atol=1e-1, rtol=1e-1), "mismatch vs f32 reference"

    print("KERNEL_OK")
</pallas_src>

<mosaic_0001>
module attributes {stable_mosaic.version = 11 : i64} {
  func.func @_matmul_stats_kernel(%arg0: i32, %arg1: i32, %arg2: i32, %arg3: memref<32x128xbf16, #tpu.memory_space<vmem>>, %arg4: memref<128x128xbf16, #tpu.memory_space<vmem>>, %arg5: memref<1x128xf32, #tpu.memory_space<vmem>>, %arg6: memref<32x128xbf16, #tpu.memory_space<vmem>>, %arg7: memref<1x1x128xf32, #tpu.memory_space<vmem>>, %arg8: memref<1x1x128xf32, #tpu.memory_space<vmem>>) attributes {dimension_semantics = [#tpu.dimension_semantics<parallel>, #tpu.dimension_semantics<arbitrary>, #tpu.dimension_semantics<arbitrary>], iteration_bounds = array<i64: 1, 3, 1>, scalar_prefetch = 0 : i64, scratch_operands = 0 : i64, tpu.core_type = #tpu.core_type<tc>, window_params = [{transform_indices = @transform_0, window_bounds = array<i64: 32, 128>}, {transform_indices = @transform_1, window_bounds = array<i64: 128, 128>}, {transform_indices = @transform_2, window_bounds = array<i64: 1, 128>}, {transform_indices = @transform_3, window_bounds = array<i64: 32, 128>}, {transform_indices = @transform_4, window_bounds = array<i64: 1, 1, 128>}, {transform_indices = @transform_5, window_bounds = array<i64: 1, 1, 128>}]} {
    %c0 = arith.constant 0 : index
    %c0_0 = arith.constant 0 : index
    %0 = vector.load %arg3[%c0, %c0_0] : memref<32x128xbf16, #tpu.memory_space<vmem>>, vector<32x128xbf16>
    %c0_1 = arith.constant 0 : index
    %c0_2 = arith.constant 0 : index
    %1 = vector.load %arg4[%c0_1, %c0_2] : memref<128x128xbf16, #tpu.memory_space<vmem>>, vector<128x128xbf16>
    %cst = arith.constant dense<0.000000e+00> : vector<32x128xf32>
    %2 = tpu.matmul %0, %1, %cst {dimension_numbers = #tpu.dot_dimension_numbers<[1], [1], [0], [0], [0, 0, 1, 0], [], []>} : vector<32x128xbf16>, vector<128x128xbf16>, vector<32x128xf32> -> vector<32x128xf32>
    %c0_3 = arith.constant 0 : index
    %c0_4 = arith.constant 0 : index
    %3 = vector.load %arg5[%c0_3, %c0_4] : memref<1x128xf32, #tpu.memory_space<vmem>>, vector<1x128xf32>
    %4 = vector.broadcast %3 : vector<1x128xf32> to vector<32x128xf32>
    %5 = arith.addf %2, %4 : vector<32x128xf32>
    %cst_5 = arith.constant 0.000000e+00 : f32
    %6 = vector.broadcast %cst_5 : f32 to vector<32x128xf32>
    %7 = arith.cmpf oge, %5, %6 : vector<32x128xf32>
    %cst_6 = arith.constant 0.00999999977 : f32
    %8 = vector.broadcast %cst_6 : f32 to vector<32x128xf32>
    %9 = arith.mulf %8, %5 : vector<32x128xf32>
    %10 = arith.select %7, %5, %9 : vector<32x128xi1>, vector<32x128xf32>
    %11 = arith.truncf %10 : vector<32x128xf32> to vector<32x128xbf16>
    %c0_7 = arith.constant 0 : index
    %c0_8 = arith.constant 0 : index
    %12 = vector.load %arg6[%c0_7, %c0_8] : memref<32x128xbf16, #tpu.memory_space<vmem>>, vector<32x128xbf16>
    tpu.vector_store %arg6[%c0_7, %c0_8], %11 {strides = array<i32>} : memref<32x128xbf16, #tpu.memory_space<vmem>>, vector<32x128xbf16>,
    %c0_i32 = arith.constant 0 : i32
    %13 = arith.cmpi eq, %arg0, %c0_i32 : i32
    %14 = arith.extui %13 : i1 to i32
    %c0_i32_9 = arith.constant 0 : i32
    %15 = arith.cmpi ne, %14, %c0_i32_9 : i32
    scf.if %15 {
      %19 = tpu.iota {dimensions = array<i32: 0>} : vector<32x128xi32>
      %c18_i32 = arith.constant 18 : i32
      %20 = vector.broadcast %c18_i32 : i32 to vector<32x128xi32>
      %21 = arith.cmpi slt, %19, %20 : vector<32x128xi32>
      %cst_12 = arith.constant 0.000000e+00 : f32
      %22 = vector.broadcast %cst_12 : f32 to vector<32x128xf32>
      %23 = arith.select %21, %10, %22 : vector<32x128xi1>, vector<32x128xf32>
      %cst_13 = arith.constant dense<0.000000e+00> : vector<128xf32>
      %24 = vector.multi_reduction <add>, %23, %cst_13 [0] : vector<32x128xf32> to vector<128xf32>
      %25 = vector.shape_cast %24 : vector<128xf32> to vector<1x128xf32>
      %26 = vector.shape_cast %25 : vector<1x128xf32> to vector<1x1x128xf32>
      %c0_14 = arith.constant 0 : index
      %c0_15 = arith.constant 0 : index
      %c0_16 = arith.constant 0 : index
      %27 = vector.load %arg7[%c0_14, %c0_15, %c0_16] : memref<1x1x128xf32, #tpu.memory_space<vmem>>, vector<1x1x128xf32>
      tpu.vector_store %arg7[%c0_14, %c0_15, %c0_16], %26 {strides = array<i32>} : memref<1x1x128xf32, #tpu.memory_space<vmem>>, vector<1x1x128xf32>,
      %28 = arith.mulf %23, %23 : vector<32x128xf32>
      %cst_17 = arith.constant dense<0.000000e+00> : vector<128xf32>
      %29 = vector.multi_reduction <add>, %28, %cst_17 [0] : vector<32x128xf32> to vector<128xf32>
      %30 = vector.shape_cast %29 : vector<128xf32> to vector<1x128xf32>
      %31 = vector.shape_cast %30 : vector<1x128xf32> to vector<1x1x128xf32>
      %c0_18 = arith.constant 0 : index
      %c0_19 = arith.constant 0 : index
      %c0_20 = arith.constant 0 : index
      %32 = vector.load %arg8[%c0_18, %c0_19, %c0_20] : memref<1x1x128xf32, #tpu.memory_space<vmem>>, vector<1x1x128xf32>
      tpu.vector_store %arg8[%c0_18, %c0_19, %c0_20], %31 {strides = array<i32>} : memref<1x1x128xf32, #tpu.memory_space<vmem>>, vector<1x1x128xf32>,
    } else {
    }
    %c0_i32_10 = arith.constant 0 : i32
    %16 = arith.cmpi ne, %arg0, %c0_i32_10 : i32
    %17 = arith.extui %16 : i1 to i32
    %c0_i32_11 = arith.constant 0 : i32
    %18 = arith.cmpi ne, %17, %c0_i32_11 : i32
    scf.if %18 {
      %cst_12 = arith.constant dense<0.000000e+00> : vector<128xf32>
      %19 = vector.multi_reduction <add>, %10, %cst_12 [0] : vector<32x128xf32> to vector<128xf32>
      %20 = vector.shape_cast %19 : vector<128xf32> to vector<1x128xf32>
      %21 = vector.shape_cast %20 : vector<1x128xf32> to vector<1x1x128xf32>
      %c0_13 = arith.constant 0 : index
      %c0_14 = arith.constant 0 : index
      %c0_15 = arith.constant 0 : index
      %22 = vector.load %arg7[%c0_13, %c0_14, %c0_15] : memref<1x1x128xf32, #tpu.memory_space<vmem>>, vector<1x1x128xf32>
      tpu.vector_store %arg7[%c0_13, %c0_14, %c0_15], %21 {strides = array<i32>} : memref<1x1x128xf32, #tpu.memory_space<vmem>>, vector<1x1x128xf32>,
      %23 = arith.mulf %10, %10 : vector<32x128xf32>
      %cst_16 = arith.constant dense<0.000000e+00> : vector<128xf32>
      %24 = vector.multi_reduction <add>, %23, %cst_16 [0] : vector<32x128xf32> to vector<128xf32>
      %25 = vector.shape_cast %24 : vector<128xf32> to vector<1x128xf32>
      %26 = vector.shape_cast %25 : vector<1x128xf32> to vector<1x1x128xf32>
      %c0_17 = arith.constant 0 : index
      %c0_18 = arith.constant 0 : index
      %c0_19 = arith.constant 0 : index
      %27 = vector.load %arg8[%c0_17, %c0_18, %c0_19] : memref<1x1x128xf32, #tpu.memory_space<vmem>>, vector<1x1x128xf32>
      tpu.vector_store %arg8[%c0_17, %c0_18, %c0_19], %26 {strides = array<i32>} : memref<1x1x128xf32, #tpu.memory_space<vmem>>, vector<1x1x128xf32>,
    } else {
    }
    return
  }
  func.func @transform_0(%arg0: i32, %arg1: i32, %arg2: i32) -> (i32, i32) {
    %c0_i32 = arith.constant 0 : i32
    return %arg0, %arg2 : i32, i32
  }
  func.func @transform_1(%arg0: i32, %arg1: i32, %arg2: i32) -> (i32, i32) {
    %c0_i32 = arith.constant 0 : i32
    return %arg1, %arg2 : i32, i32
  }
  func.func @transform_2(%arg0: i32, %arg1: i32, %arg2: i32) -> (i32, i32) {
    %c0_i32 = arith.constant 0 : i32
    %c0_i32_0 = arith.constant 0 : i32
    return %c0_i32, %arg1 : i32, i32
  }
  func.func @transform_3(%arg0: i32, %arg1: i32, %arg2: i32) -> (i32, i32) {
    %c0_i32 = arith.constant 0 : i32
    return %arg0, %arg1 : i32, i32
  }
  func.func @transform_4(%arg0: i32, %arg1: i32, %arg2: i32) -> (i32, i32, i32) {
    %c0_i32 = arith.constant 0 : i32
    %c0_i32_0 = arith.constant 0 : i32
    return %arg0, %c0_i32, %arg1 : i32, i32, i32
  }
  func.func @transform_5(%arg0: i32, %arg1: i32, %arg2: i32) -> (i32, i32, i32) {
    %c0_i32 = arith.constant 0 : i32
    %c0_i32_0 = arith.constant 0 : i32
    return %arg0, %c0_i32, %arg1 : i32, i32, i32
  }
}

module attributes {stable_mosaic.version = 11 : i64} {
  func.func @_scale_shift_kernel(%arg0: i32, %arg1: memref<32x384xbf16, #tpu.memory_space<vmem>>, %arg2: memref<1x384xf32, #tpu.memory_space<vmem>>, %arg3: memref<1x384xf32, #tpu.memory_space<vmem>>, %arg4: memref<32x384xf32, #tpu.memory_space<vmem>>) attributes {dimension_semantics = [#tpu.dimension_semantics<parallel>], iteration_bounds = array<i64: 1>, scalar_prefetch = 0 : i64, scratch_operands = 0 : i64, tpu.core_type = #tpu.core_type<tc>, window_params = [{transform_indices = @transform_0, window_bounds = array<i64: 32, 384>}, {pipeline_mode = #tpu.pipeline_mode<synchronous>, transform_indices = @transform_1, window_bounds = array<i64: 1, 384>}, {pipeline_mode = #tpu.pipeline_mode<synchronous>, transform_indices = @transform_2, window_bounds = array<i64: 1, 384>}, {transform_indices = @transform_3, window_bounds = array<i64: 32, 384>}]} {
    %c0 = arith.constant 0 : index
    %c0_0 = arith.constant 0 : index
    %0 = vector.load %arg1[%c0, %c0_0] : memref<32x384xbf16, #tpu.memory_space<vmem>>, vector<32x384xbf16>
    %1 = arith.extf %0 : vector<32x384xbf16> to vector<32x384xf32>
    %c0_1 = arith.constant 0 : index
    %c0_2 = arith.constant 0 : index
    %2 = vector.load %arg2[%c0_1, %c0_2] : memref<1x384xf32, #tpu.memory_space<vmem>>, vector<1x384xf32>
    %3 = vector.broadcast %2 : vector<1x384xf32> to vector<32x384xf32>
    %4 = arith.mulf %1, %3 : vector<32x384xf32>
    %c0_3 = arith.constant 0 : index
    %c0_4 = arith.constant 0 : index
    %5 = vector.load %arg3[%c0_3, %c0_4] : memref<1x384xf32, #tpu.memory_space<vmem>>, vector<1x384xf32>
    %6 = vector.broadcast %5 : vector<1x384xf32> to vector<32x384xf32>
    %7 = arith.addf %4, %6 : vector<32x384xf32>
    %c0_5 = arith.constant 0 : index
    %c0_6 = arith.constant 0 : index
    %8 = vector.load %arg4[%c0_5, %c0_6] : memref<32x384xf32, #tpu.memory_space<vmem>>, vector<32x384xf32>
    tpu.vector_store %arg4[%c0_5, %c0_6], %7 {strides = array<i32>} : memref<32x384xf32, #tpu.memory_space<vmem>>, vector<32x384xf32>,
    return
  }
  func.func @transform_0(%arg0: i32) -> (i32, i32) {
    %c0_i32 = arith.constant 0 : i32
    %c0_i32_0 = arith.constant 0 : i32
    return %arg0, %c0_i32 : i32, i32
  }
  func.func @transform_1(%arg0: i32) -> (i32, i32) {
    %c0_i32 = arith.constant 0 : i32
    %c0_i32_0 = arith.constant 0 : i32
    %c0_i32_1 = arith.constant 0 : i32
    return %c0_i32, %c0_i32_0 : i32, i32
  }
  func.func @transform_2(%arg0: i32) -> (i32, i32) {
    %c0_i32 = arith.constant 0 : i32
    %c0_i32_0 = arith.constant 0 : i32
    %c0_i32_1 = arith.constant 0 : i32
    return %c0_i32, %c0_i32_0 : i32, i32
  }
  func.func @transform_3(%arg0: i32) -> (i32, i32) {
    %c0_i32 = arith.constant 0 : i32
    %c0_i32_0 = arith.constant 0 : i32
    return %arg0, %c0_i32 : i32, i32
  }
}

</mosaic_0001>

<llo_original>
// kernel: linear_layer_forward.2
$region0: #{linear_layer_forward.2}
  #allocation0 [shape = 'u32[]', space=smem, size = 0x4, offset = 0x4, fixed_abs, tag = 'smem constant byte address 0x4 - core index']
  #allocation1 [shape = 'u32[72,128]{1,0:T(1,128)}', space=vmem, size = 0x9000, scoped, tag = 'internal scratch']
  %s0 = inlined_call_operand.vmem [shape: bf16[32,128], index: 0, kind: input, shape index: {}]
  %s1 = inlined_call_operand.vmem [shape: bf16[384,128], index: 1, kind: input, shape index: {}]
  %s2 = inlined_call_operand.vmem [shape: f32[1,384], index: 2, kind: input, shape index: {}]
  %s3 = inlined_call_operand.vmem [shape: bf16[32,384], index: 3, kind: output, shape index: {0}]
  %s4 = inlined_call_operand.vmem [shape: f32[1,1,384], index: 4, kind: output, shape index: {1}]
  %s5 = inlined_call_operand.vmem [shape: f32[1,1,384], index: 5, kind: output, shape index: {2}]
  %6 = xla_tuple %s3, %s4, %s5
  %s7 = sld [smem:[#allocation0]]
  $region106: #{linear_layer_forward.2} parent=0
    _
  %s9 = ssub.s32 1, %s7
  %s10 = scalar_select 0, %s9, %s7
  $region1: #{linear_layer_forward.2} parent=0
    #allocation2 [shape = 'u8[16384]{0}', space=vmem, size = 0x4000, scoped, tag = 'output window, operand 0']
    loop: start=0, step=1, limit=5
    $region2: #{linear_layer_forward.2} parent=1 // loop_pre_header
      _
    $region3: #{linear_layer_forward.2} parent=1 // loop_header
      %s12 = sphi 0, %s16
      %p13 = scmp.ge.s32.totalorder %s12, 5
      %s19 = sphi 0, %s38
      %s20 = sphi 0, %s34
      %s21 = sphi 0, %s30
      %s22 = sphi 0, %s19
      %s23 = sphi 0, %s20
      %s24 = sphi 0, %s21
      %s25 = sphi 0, %s22
      %s26 = sphi 0, %s23
      %s27 = sphi 0, %s24
      %s43 = sphi 0, %s45
      %s46 = sphi 0, %s43
      %s47 = sphi 0, %s46
      %s63 = sphi 0, %s47
      %s71 = sphi 0, %s73
      %s74 = sphi 0, %s71
      %s75 = sphi 0, %s74
      %s91 = sphi 0, %s75
      %s97 = sphi 0, %s99
      %s100 = sphi 0, %s97
      %s101 = sphi 0, %s100
      %s117 = sphi 0, %s101
      %s125 = sphi 0, %s127
      %s128 = sphi 0, %s125
      %s129 = sphi 0, %s128
      %s145 = sphi 0, %s129
      %s153 = sphi 0, %s155
      %s156 = sphi 0, %s153
      %s157 = sphi 0, %s156
      %s173 = sphi 0, %s157
      %s181 = sphi 0, %s183
      %s184 = sphi 0, %s181
      %s185 = sphi 0, %s184
      %s201 = sphi 0, %s185
    $region4: #{linear_layer_forward.2} parent=1 // loop_header_branch
      %15 = sbr.rel (%p13) target = $region8
    $region5: #{linear_layer_forward.2} parent=1 // loop_body
      %s17 = ssub.s32 %s12, 1
      %s18 = ssub.s32 %s12, 2
      %s28 = sadd.s32 1, %s21
      %p29 = scmp.ge.s32.totalorder %s28, 1
      %s30 = scalar_select %p29, 0, %s28
      %s31 = sadd.s32 1, %s20
      %s32 = scalar_select %p29, %s31, %s20
      %p33 = scmp.ge.s32.totalorder %s32, 3
      %s34 = scalar_select %p33, 0, %s32
      %s35 = sadd.s32 1, %s19
      %s36 = scalar_select %p33, %s35, %s19
      %p37 = scmp.ge.s32.totalorder %s36, 1
      %s38 = scalar_select %p37, 0, %s36
      %s39 = ssub.s32 %s19, %s38
      %s40 = ssub.s32 %s21, %s30
      %s41 = sor.u32 %s39, %s40
      %p42 = scmp.eq.s32.totalorder %s41, 0
      %s44 = sadd.s32 %s43, 1
      %s45 = scalar_select %p42, %s43, %s44
      %p48 = pneg %p42
      %p49 = scmp.eq.s32.totalorder %s12, 2
      %p50 = por %p48, %p49
      %p51 = scmp.ne.s32.totalorder %s43, %s46
      %p52 = scmp.eq.s32.totalorder %s12, 0
      %p53 = por %p51, %p52
      %p54 = scmp.ne.s32.totalorder %s43, %s46
      %p55 = scmp.eq.s32.totalorder %s17, 2
      %p56 = por %p54, %p55
      %p57 = scmp.ne.s32.totalorder %s46, %s47
      %p58 = scmp.eq.s32.totalorder %s17, 0
      %p59 = por %p57, %p58
      %p60 = scmp.ne.s32.totalorder %s46, %s47
      %p61 = scmp.eq.s32.totalorder %s18, 2
      %p62 = por %p60, %p61
      %p64 = scmp.ne.s32.totalorder %s47, %s63
      %p65 = scmp.eq.s32.totalorder %s18, 0
      %p66 = por %p64, %p65
      %s67 = ssub.s32 %s20, %s34
      %s68 = ssub.s32 %s21, %s30
      %s69 = sor.u32 %s67, %s68
      %p70 = scmp.eq.s32.totalorder %s69, 0
      %s72 = sadd.s32 %s71, 1
      %s73 = scalar_select %p70, %s71, %s72
      %p76 = pneg %p70
      %p77 = scmp.eq.s32.totalorder %s12, 2
      %p78 = por %p76, %p77
      %p79 = scmp.ne.s32.totalorder %s71, %s74
      %p80 = scmp.eq.s32.totalorder %s12, 0
      %p81 = por %p79, %p80
      %p82 = scmp.ne.s32.totalorder %s71, %s74
      %p83 = scmp.eq.s32.totalorder %s17, 2
      %p84 = por %p82, %p83
      %p85 = scmp.ne.s32.totalorder %s74, %s75
      %p86 = scmp.eq.s32.totalorder %s17, 0
      %p87 = por %p85, %p86
      %p88 = scmp.ne.s32.totalorder %s74, %s75
      %p89 = scmp.eq.s32.totalorder %s18, 2
      %p90 = por %p88, %p89
      %p92 = scmp.ne.s32.totalorder %s75, %s91
      %p93 = scmp.eq.s32.totalorder %s18, 0
      %p94 = por %p92, %p93
      %s95 = ssub.s32 %s20, %s34
      %p96 = scmp.eq.s32.totalorder %s95, 0
      %s98 = sadd.s32 %s97, 1
      %s99 = scalar_select %p96, %s97, %s98
      %p102 = pneg %p96
      %p103 = scmp.eq.s32.totalorder %s12, 2
      %p104 = por %p102, %p103
      %p105 = scmp.ne.s32.totalorder %s97, %s100
      %p106 = scmp.eq.s32.totalorder %s12, 0
      %p107 = por %p105, %p106
      %p108 = scmp.ne.s32.totalorder %s97, %s100
      %p109 = scmp.eq.s32.totalorder %s17, 2
      %p110 = por %p108, %p109
      %p111 = scmp.ne.s32.totalorder %s100, %s101
      %p112 = scmp.eq.s32.totalorder %s17, 0
      %p113 = por %p111, %p112
      %p114 = scmp.ne.s32.totalorder %s100, %s101
      %p115 = scmp.eq.s32.totalorder %s18, 2
      %p116 = por %p114, %p115
      %p118 = scmp.ne.s32.totalorder %s101, %s117
      %p119 = scmp.eq.s32.totalorder %s18, 0
      %p120 = por %p118, %p119
      %s121 = ssub.s32 %s19, %s38
      %s122 = ssub.s32 %s20, %s34
      %s123 = sor.u32 %s121, %s122
      %p124 = scmp.eq.s32.totalorder %s123, 0
      %s126 = sadd.s32 %s125, 1
      %s127 = scalar_select %p124, %s125, %s126
      %p130 = pneg %p124
      %p131 = scmp.eq.s32.totalorder %s12, 2
      %p132 = por %p130, %p131
      %p133 = scmp.ne.s32.totalorder %s125, %s128
      %p134 = scmp.eq.s32.totalorder %s12, 0
      %p135 = por %p133, %p134
      %p136 = scmp.ne.s32.totalorder %s125, %s128
      %p137 = scmp.eq.s32.totalorder %s17, 2
      %p138 = por %p136, %p137
      %p139 = scmp.ne.s32.totalorder %s128, %s129
      %p140 = scmp.eq.s32.totalorder %s17, 0
      %p141 = por %p139, %p140
      %p142 = scmp.ne.s32.totalorder %s128, %s129
      %p143 = scmp.eq.s32.totalorder %s18, 2
      %p144 = por %p142, %p143
      %p146 = scmp.ne.s32.totalorder %s129, %s145
      %p147 = scmp.eq.s32.totalorder %s18, 0
      %p148 = por %p146, %p147
      %s149 = ssub.s32 %s19, %s38
      %s150 = ssub.s32 %s20, %s34
      %s151 = sor.u32 %s149, %s150
      %p152 = scmp.eq.s32.totalorder %s151, 0
      %s154 = sadd.s32 %s153, 1
      %s155 = scalar_select %p152, %s153, %s154
      %p158 = pneg %p152
      %p159 = scmp.eq.s32.totalorder %s12, 2
      %p160 = por %p158, %p159
      %p161 = scmp.ne.s32.totalorder %s153, %s156
      %p162 = scmp.eq.s32.totalorder %s12, 0
      %p163 = por %p161, %p162
      %p164 = scmp.ne.s32.totalorder %s153, %s156
      %p165 = scmp.eq.s32.totalorder %s17, 2
      %p166 = por %p164, %p165
      %p167 = scmp.ne.s32.totalorder %s156, %s157
      %p168 = scmp.eq.s32.totalorder %s17, 0
      %p169 = por %p167, %p168
      %p170 = scmp.ne.s32.totalorder %s156, %s157
      %p171 = scmp.eq.s32.totalorder %s18, 2
      %p172 = por %p170, %p171
      %p174 = scmp.ne.s32.totalorder %s157, %s173
      %p175 = scmp.eq.s32.totalorder %s18, 0
      %p176 = por %p174, %p175
      %s177 = ssub.s32 %s19, %s38
      %s178 = ssub.s32 %s20, %s34
      %s179 = sor.u32 %s177, %s178
      %p180 = scmp.eq.s32.totalorder %s179, 0
      %s182 = sadd.s32 %s181, 1
      %s183 = scalar_select %p180, %s181, %s182
      %p186 = pneg %p180
      %p187 = scmp.eq.s32.totalorder %s12, 2
      %p188 = por %p186, %p187
      %p189 = scmp.ne.s32.totalorder %s181, %s184
      %p190 = scmp.eq.s32.totalorder %s12, 0
      %p191 = por %p189, %p190
      %p192 = scmp.ne.s32.totalorder %s181, %s184
      %p193 = scmp.eq.s32.totalorder %s17, 2
      %p194 = por %p192, %p193
      %p195 = scmp.ne.s32.totalorder %s184, %s185
      %p196 = scmp.eq.s32.totalorder %s17, 0
      %p197 = por %p195, %p196
      %p198 = scmp.ne.s32.totalorder %s184, %s185
      %p199 = scmp.eq.s32.totalorder %s18, 2
      %p200 = por %p198, %p199
      %p202 = scmp.ne.s32.totalorder %s185, %s201
      %p203 = scmp.eq.s32.totalorder %s18, 0
      %p204 = por %p202, %p203
      %p205 = scmp.le.s32.totalorder 1, %s12
      %p206 = scmp.lt.s32.totalorder %s12, 4
      %p207 = pnand %p205, %p206
      %p208 = pneg %p207
      // Predicated region
      $region9: #{linear_layer_forward.2} parent=5 // pred_check
        _
      $region10: #{linear_layer_forward.2} parent=5 // pred_check_branch
        %210 = sbr.rel (%p207) target = $region12
      $region11: #{linear_layer_forward.2} parent=5 // pred_region
        %s211 = ssub.s32 %s12, 1
        // Predicated region
        $region13: #{linear_layer_forward.2} parent=11 // pred_check
          %p212 = pneg %p59
        $region14: #{linear_layer_forward.2} parent=11 // pred_check_branch
          %214 = sbr.rel (%p212) target = $region16
        $region15: #{linear_layer_forward.2} parent=11 // pred_region
          %s215 = smul.u32 4, %s22
          %p216 = scmp.lt.s32.totalorder %s215, 3
          %s217 = scalar_select %p216, %s215, 3
          %p218 = scmp.lt.s32.totalorder %s24, 0
          %s219 = scalar_select %p218, %s24, 0
          %s220 = sadd.s32 %s219, %s217
          %s221 = smul.addr %s220, 4
          %s222 = scalar_lea.vmem %s0, %s221
          %s223 = smul.u32 4, %s22
        $region16: #{linear_layer_forward.2} parent=11 // pred_fallthru
          _
      $region12: #{linear_layer_forward.2} parent=5 // pred_fallthru
        _
      %p224 = scmp.lt.s32.totalorder %s12, 3
      // Predicated region
      $region17: #{linear_layer_forward.2} parent=5 // pred_check
        %p225 = pneg %p224
      $region18: #{linear_layer_forward.2} parent=5 // pred_check_branch
        %227 = sbr.rel (%p225) target = $region20
      $region19: #{linear_layer_forward.2} parent=5 // pred_region
        // Predicated region
        $region21: #{linear_layer_forward.2} parent=19 // pred_check
          %p228 = pneg %p81
        $region22: #{linear_layer_forward.2} parent=19 // pred_check_branch
          %230 = sbr.rel (%p228) target = $region24
        $region23: #{linear_layer_forward.2} parent=19 // pred_region
          %s231 = smul.u32 16, %s20
          %p232 = scmp.lt.s32.totalorder %s231, 47
          %s233 = scalar_select %p232, %s231, 47
          %p234 = scmp.lt.s32.totalorder %s21, 0
          %s235 = scalar_select %p234, %s21, 0
          %s236 = sadd.s32 %s235, %s233
          %s237 = smul.addr %s236, 4
          %s238 = scalar_lea.vmem %s1, %s237
          %s239 = smul.u32 16, %s20
        $region24: #{linear_layer_forward.2} parent=19 // pred_fallthru
          _
        // Predicated region
        $region25: #{linear_layer_forward.2} parent=19 // pred_check
          %p240 = pneg %p107
        $region26: #{linear_layer_forward.2} parent=19 // pred_check_branch
          %242 = sbr.rel (%p240) target = $region28
        $region27: #{linear_layer_forward.2} parent=19 // pred_region
          %p243 = scmp.lt.s32.totalorder %s20, 2
          %s244 = scalar_select %p243, %s20, 2
          %s245 = scalar_lea.vmem %s2, %s244
        $region28: #{linear_layer_forward.2} parent=19 // pred_fallthru
          _
      $region20: #{linear_layer_forward.2} parent=5 // pred_fallthru
        _
      %p246 = scmp.le.s32.totalorder 1, %s12
      %p247 = scmp.lt.s32.totalorder %s12, 4
      %p248 = pnand %p246, %p247
      %p249 = pneg %p248
      // Predicated region
      $region29: #{linear_layer_forward.2} parent=5 // pred_check
        _
      $region30: #{linear_layer_forward.2} parent=5 // pred_check_branch
        %251 = sbr.rel (%p248) target = $region32
      $region31: #{linear_layer_forward.2} parent=5 // pred_region
        %s252 = ssub.s32 %s12, 1
        %s253 = smul.u32 4, %s22
        %p254 = scmp.lt.s32.totalorder %s253, 3
        %s255 = scalar_select %p254, %s253, 3
        %p256 = scmp.lt.s32.totalorder %s24, 0
        %s257 = scalar_select %p256, %s24, 0
        %s258 = sadd.s32 %s257, %s255
        %s259 = smul.addr %s258, 4
        %s260 = scalar_lea.vmem %s0, %s259
        %p261 = pneg %p59
        %p262 = pneg %p56
        %s263 = smul.u32 16, %s23
        %p264 = scmp.lt.s32.totalorder %s263, 47
        %s265 = scalar_select %p264, %s263, 47
        %p266 = scmp.lt.s32.totalorder %s24, 0
        %s267 = scalar_select %p266, %s24, 0
        %s268 = sadd.s32 %s267, %s265
        %s269 = smul.addr %s268, 4
        %s270 = scalar_lea.vmem %s1, %s269
        %p271 = pneg %p87
        %p272 = pneg %p84
        %p273 = scmp.lt.s32.totalorder %s23, 2
        %s274 = scalar_select %p273, %s23, 2
        %s275 = scalar_lea.vmem %s2, %s274
        %p276 = pneg %p113
        %p277 = pneg %p110
        %p278 = pneg %p141
        %p279 = pneg %p138
        %s280 = sand.u32 %s128, 1
        %s281 = sand.u32 %s128, 1
        %s282 = smul.addr %s281, 16
        %s283 = scalar_lea.vmem [#allocation2], %s282
        %p284 = pneg %p169
        %p285 = pneg %p166
        %p286 = scmp.lt.s32.totalorder %s22, 0
        %s287 = scalar_select %p286, %s22, 0
        %p288 = scmp.lt.s32.totalorder %s23, 2
        %s289 = scalar_select %p288, %s23, 2
        %s290 = smul.addr %s287, 3
        %s291 = sadd.s32 %s289, %s290
        %s292 = scalar_lea.vmem %s4, %s291
        %p293 = pneg %p197
        %p294 = pneg %p194
        %p295 = scmp.lt.s32.totalorder %s22, 0
        %s296 = scalar_select %p295, %s22, 0
        %p297 = scmp.lt.s32.totalorder %s23, 2
        %s298 = scalar_select %p297, %s23, 2
        %s299 = smul.addr %s296, 3
        %s300 = sadd.s32 %s298, %s299
        %s301 = scalar_lea.vmem %s5, %s300
        %s302 = smul.u32 4, %s22
        %p303 = scmp.lt.s32.totalorder %s302, 3
        %s304 = scalar_select %p303, %s302, 3
        %p305 = scmp.lt.s32.totalorder %s24, 0
        %s306 = scalar_select %p305, %s24, 0
        %s307 = sadd.s32 %s306, %s304
        %s308 = smul.addr %s307, 4
        %s309 = scalar_lea.vmem %s0, %s308
        %s310 = smul.u32 4, %s22
        %s311 = smul.u32 16, %s23
        %p312 = scmp.lt.s32.totalorder %s311, 47
        %s313 = scalar_select %p312, %s311, 47
        %p314 = scmp.lt.s32.totalorder %s24, 0
        %s315 = scalar_select %p314, %s24, 0
        %s316 = sadd.s32 %s315, %s313
        %s317 = smul.addr %s316, 4
        %s318 = scalar_lea.vmem %s1, %s317
        %s319 = smul.u32 16, %s23
        %p320 = scmp.lt.s32.totalorder %s23, 2
        %s321 = scalar_select %p320, %s23, 2
        %s322 = scalar_lea.vmem %s2, %s321
        %s323 = smul.u32 4, %s22
        %p324 = scmp.lt.s32.totalorder %s22, 0
        %s325 = scalar_select %p324, %s22, 0
        %p326 = scmp.lt.s32.totalorder %s23, 2
        %s327 = scalar_select %p326, %s23, 2
        %s328 = smul.addr %s325, 3
        %s329 = sadd.s32 %s327, %s328
        %s330 = scalar_lea.vmem %s4, %s329
        %p331 = scmp.lt.s32.totalorder %s22, 0
        %s332 = scalar_select %p331, %s22, 0
        %p333 = scmp.lt.s32.totalorder %s23, 2
        %s334 = scalar_select %p333, %s23, 2
        %s335 = smul.addr %s332, 3
        %s336 = sadd.s32 %s334, %s335
        %s337 = scalar_lea.vmem %s5, %s336
        %v338 = vld [vmem:[%s309] sm:$0xf]
        %v339 = vld [vmem:[%s309 + $0x4] sm:$0xf]
        %v340 = vld [vmem:[%s309 + $0x8] sm:$0xf]
        %v341 = vld [vmem:[%s309 + $0xc] sm:$0xf]
        %v342 = vld [vmem:[%s318] sm:$0xf]
        %v343 = vld [vmem:[%s318 + $0x4] sm:$0xf]
        %v344 = vld [vmem:[%s318 + $0x8] sm:$0xf]
        %v345 = vld [vmem:[%s318 + $0xc] sm:$0xf]
        %v346 = vld [vmem:[%s318 + $0x10] sm:$0xf]
        %v347 = vld [vmem:[%s318 + $0x14] sm:$0xf]
        %v348 = vld [vmem:[%s318 + $0x18] sm:$0xf]
        %v349 = vld [vmem:[%s318 + $0x1c] sm:$0xf]
        %v350 = vld [vmem:[%s318 + $0x20] sm:$0xf]
        %v351 = vld [vmem:[%s318 + $0x24] sm:$0xf]
        %v352 = vld [vmem:[%s318 + $0x28] sm:$0xf]
        %v353 = vld [vmem:[%s318 + $0x2c] sm:$0xf]
        %v354 = vld [vmem:[%s318 + $0x30] sm:$0xf]
        %v355 = vld [vmem:[%s318 + $0x34] sm:$0xf]
        %v356 = vld [vmem:[%s318 + $0x38] sm:$0xf]
        %v357 = vld [vmem:[%s318 + $0x3c] sm:$0xf]
        %v358 = vld [vmem:[%s322] sm:$0x1]
        %v360 = vperm.slane %v358, 0
        %v366 = vunpack.c.l.b16 %v338
        %v367 = vunpack.c.l.b16 %v339
        %v368 = vunpack.c.l.b16 %v340
        %v369 = vunpack.c.l.b16 %v341
        %v370 = vpack.c.b16 %v367, %v366
        %v371 = vpack.c.b16 %v369, %v368
        %v390 = vunpack.c.l.b16 %v342
        %v391 = vunpack.c.l.b16 %v343
        %v392 = vunpack.c.l.b16 %v344
        %v393 = vunpack.c.l.b16 %v345
        %v394 = vunpack.c.l.b16 %v346
        %v395 = vunpack.c.l.b16 %v347
        %v396 = vunpack.c.l.b16 %v348
        %v397 = vunpack.c.l.b16 %v349
        %v398 = vunpack.c.l.b16 %v350
        %v399 = vunpack.c.l.b16 %v351
        %v400 = vunpack.c.l.b16 %v352
        %v401 = vunpack.c.l.b16 %v353
        %v402 = vunpack.c.l.b16 %v354
        %v403 = vunpack.c.l.b16 %v355
        %v404 = vunpack.c.l.b16 %v356
        %v405 = vunpack.c.l.b16 %v357
        %v406 = vpack.c.b16 %v391, %v390
        %v407 = vpack.c.b16 %v393, %v392
        %v408 = vpack.c.b16 %v395, %v394
        %v409 = vpack.c.b16 %v397, %v396
        %v410 = vpack.c.b16 %v399, %v398
        %v411 = vpack.c.b16 %v401, %v400
        %v412 = vpack.c.b16 %v403, %v402
        %v413 = vpack.c.b16 %v405, %v404
        %422 = vmatpush.bf16.xpose.msra.mxu0 %v413
        %423 = vmatpush.bf16.xpose.msra.mxu0 %v412
        %424 = vmatpush.bf16.xpose.msra.mxu0 %v411
        %425 = vmatpush.bf16.xpose.msra.mxu0 %v410
        %426 = vmatpush.bf16.xpose.msra.mxu0 %v409
        %427 = vmatpush.bf16.xpose.msra.mxu0 %v408
        %428 = vmatpush.bf16.xpose.msra.mxu0 %v407
        %429 = vmatpush.bf16.xpose.msra.mxu0 %v406
        %430 = vmatmul.bf16.gmra.mxu0 %v370
        %v431 = vpop.f32.mrf.mxu0
        %v432 = vadd.f32 %v360, %v431
        %v433 = vpop.f32.mrf.mxu0
        %v434 = vadd.f32 %v360, %v433
        %435 = vmatmul.bf16.gmra.mxu0 %v371
        %v436 = vpop.f32.mrf.mxu0
        %v437 = vadd.f32 %v360, %v436
        %v438 = vpop.f32.mrf.mxu0
        %v439 = vadd.f32 %v360, %v438
        %440 = vdwg.mxu0
        %vm441 = vcmp.ge.f32.partialorder %v432, 0.0
        %vm442 = vcmp.ge.f32.partialorder %v434, 0.0
        %vm443 = vcmp.ge.f32.partialorder %v437, 0.0
        %vm444 = vcmp.ge.f32.partialorder %v439, 0.0
        %v445 = vmul.f32 %v432, 0.01
        %v446 = vmul.f32 %v434, 0.01
        %v447 = vmul.f32 %v437, 0.01
        %v448 = vmul.f32 %v439, 0.01
        %v449 = vsel %vm441, %v432, %v445
        %v450 = vsel %vm442, %v434, %v446
        %v451 = vsel %vm443, %v437, %v447
        %v452 = vsel %vm444, %v439, %v448
        %v453 = vpack.c.bf16 %v449, %v449
        %v454 = vpack.c.bf16 %v450, %v450
        %v455 = vpack.c.bf16 %v451, %v451
        %v456 = vpack.c.bf16 %v452, %v452
        %457 = vst [vmem:[%s283] sm:$0xf] %v453
        %458 = vst [vmem:[%s283 + $0x4] sm:$0xf] %v454
        %459 = vst [vmem:[%s283 + $0x8] sm:$0xf] %v455
        %460 = vst [vmem:[%s283 + $0xc] sm:$0xf] %v456
        %p461 = scmp.eq.s32.totalorder %s22, 0
        // Predicated region
        $region33: #{linear_layer_forward.2} parent=31 // pred_check
          %p462 = pneg %p461
        $region34: #{linear_layer_forward.2} parent=31 // pred_check_branch
          %464 = sbr.rel (%p462) target = $region36
        $region35: #{linear_layer_forward.2} parent=31 // pred_region
          %v465 = vlaneseq
          %v466 = vshrl.u32 %v465, 7
          %v467 = vadd.s32 %v466, 8
          %v468 = vadd.s32 %v466, 16
          %v469 = vadd.s32 %v466, 24
          %vm470 = vcmp.lt.s32.totalorder %v466, 18
          %vm471 = vcmp.lt.s32.totalorder %v467, 18
          %vm472 = vcmp.lt.s32.totalorder %v468, 18
          %vm473 = vcmp.lt.s32.totalorder %v469, 18
          %v474 = vsel %vm470, %v449, 0.0
          %v475 = vsel %vm471, %v450, 0.0
          %v476 = vsel %vm472, %v451, 0.0
          %v477 = vsel %vm473, %v452, 0.0
          %v478 = vadd.f32 %v474, %v475
          %v479 = vadd.f32 %v478, %v476
          %v480 = vadd.f32 %v479, %v477
          %v481 = vrot.slane %v480, 4
          %v482 = vadd.f32 %v480, %v481
          %v483 = vrot.slane %v482, 2
          %v484 = vadd.f32 %v482, %v483
          %v485 = vrot.slane %v484, 1
          %v486 = vadd.f32 %v484, %v485
          %487 = vst [vmem:[%s330] sm:$0x1] %v486
          %v488 = vmul.f32 %v474, %v474
          %v489 = vmul.f32 %v475, %v475
          %v490 = vmul.f32 %v476, %v476
          %v491 = vmul.f32 %v477, %v477
          %v492 = vadd.f32 %v488, %v489
          %v493 = vadd.f32 %v492, %v490
          %v494 = vadd.f32 %v493, %v491
          %v495 = vrot.slane %v494, 4
          %v496 = vadd.f32 %v494, %v495
          %v497 = vrot.slane %v496, 2
          %v498 = vadd.f32 %v496, %v497
          %v499 = vrot.slane %v498, 1
          %v500 = vadd.f32 %v498, %v499
          %501 = vst [vmem:[%s337] sm:$0x1] %v500
        $region36: #{linear_layer_forward.2} parent=31 // pred_fallthru
          _
        %p502 = scmp.ne.s32.totalorder %s22, 0
        // Predicated region
        $region37: #{linear_layer_forward.2} parent=31 // pred_check
          %p503 = pneg %p502
        $region38: #{linear_layer_forward.2} parent=31 // pred_check_branch
          %505 = sbr.rel (%p503) target = $region40
        $region39: #{linear_layer_forward.2} parent=31 // pred_region
          %v506 = vadd.f32 %v449, %v450
          %v507 = vadd.f32 %v506, %v451
          %v508 = vadd.f32 %v507, %v452
          %v509 = vrot.slane %v508, 4
          %v510 = vadd.f32 %v508, %v509
          %v511 = vrot.slane %v510, 2
          %v512 = vadd.f32 %v510, %v511
          %v513 = vrot.slane %v512, 1
          %v514 = vadd.f32 %v512, %v513
          %515 = vst [vmem:[%s330] sm:$0x1] %v514
          %v516 = vmul.f32 %v449, %v449
          %v517 = vmul.f32 %v450, %v450
          %v518 = vmul.f32 %v451, %v451
          %v519 = vmul.f32 %v452, %v452
          %v520 = vadd.f32 %v516, %v517
          %v521 = vadd.f32 %v520, %v518
          %v522 = vadd.f32 %v521, %v519
          %v523 = vrot.slane %v522, 4
          %v524 = vadd.f32 %v522, %v523
          %v525 = vrot.slane %v524, 2
          %v526 = vadd.f32 %v524, %v525
          %v527 = vrot.slane %v526, 1
          %v528 = vadd.f32 %v526, %v527
          %529 = vst [vmem:[%s337] sm:$0x1] %v528
        $region40: #{linear_layer_forward.2} parent=31 // pred_fallthru
          _
        %s530 = sand.u32 %s128, 1
        %s531 = sand.u32 %s128, 1
        %s532 = smul.addr %s531, 16
        %s533 = scalar_lea.vmem [#allocation2], %s532
        %p534 = scmp.lt.s32.totalorder %s22, 0
        %s535 = scalar_select %p534, %s22, 0
        %p536 = scmp.lt.s32.totalorder %s23, 2
        %s537 = scalar_select %p536, %s23, 2
        %s538 = smul.addr %s535, 3
        %s539 = sadd.s32 %s537, %s538
        %s540 = scalar_lea.vmem %s4, %s539
        %p541 = scmp.lt.s32.totalorder %s22, 0
        %s542 = scalar_select %p541, %s22, 0
        %p543 = scmp.lt.s32.totalorder %s23, 2
        %s544 = scalar_select %p543, %s23, 2
        %s545 = smul.addr %s542, 3
        %s546 = sadd.s32 %s544, %s545
        %s547 = scalar_lea.vmem %s5, %s546
        // Predicated region
        $region41: #{linear_layer_forward.2} parent=31 // pred_check
          %p548 = pneg %p138
        $region42: #{linear_layer_forward.2} parent=31 // pred_check_branch
          %550 = sbr.rel (%p548) target = $region44
        $region43: #{linear_layer_forward.2} parent=31 // pred_region
          %s551 = smul.u32 4, %s22
          %s552 = smul.addr %s551, 3
          %s553 = sadd.s32 %s23, %s552
          %s554 = smul.addr %s553, 4
          %s555 = scalar_lea.vmem %s3, %s554
          // Predicated region
          $region45: #{linear_layer_forward.2} parent=43 // pred_check
            _
          $region46: #{linear_layer_forward.2} parent=43 // pred_check_branch
            %557 = sbr.rel (0) target = $region48
          $region47: #{linear_layer_forward.2} parent=43 // pred_region
            // Predicated region
            $region49: #{linear_layer_forward.2} parent=47 // pred_check
              _
            $region50: #{linear_layer_forward.2} parent=47 // pred_check_branch
              %559 = sbr.rel target = $region52
            $region51: #{linear_layer_forward.2} parent=47 // pred_region
              // Predicated region
              $region64: #{linear_layer_forward.2} parent=51 // pred_check
                _
              $region65: #{linear_layer_forward.2} parent=51 // pred_check_branch
                %581 = sbr.rel (0) target = $region67
              $region66: #{linear_layer_forward.2} parent=51 // pred_region
                loop: start=0, step=1, limit=1
                $region68: #{linear_layer_forward.2} parent=66 // loop_pre_header
                  _
                $region69: #{linear_layer_forward.2} parent=66 // loop_header
                  %s583 = sphi 0, %s587
                  %p584 = scmp.ge.s32.totalorder %s583, 1
                  %s588 = sphi %s533, %s533
                  %s589 = sphi %s555, %s555
                $region70: #{linear_layer_forward.2} parent=66 // loop_header_branch
                  %586 = sbr.rel (%p584) target = $region74
                $region71: #{linear_layer_forward.2} parent=66 // loop_body
                  _
                $region72: #{linear_layer_forward.2} parent=66 // loop_footer
                  %s587 = sadd.s32 1, %s583
                $region73: #{linear_layer_forward.2} parent=66 // loop_footer_branch
                  %582 = sbr.rel target = $region69
                $region74: #{linear_layer_forward.2} parent=66 // loop_exit
                  _
                %s591 = ssub.s32 16, 1
                loop: start=0, step=1, limit=1
                $region75: #{linear_layer_forward.2} parent=66 // loop_pre_header
                  _
                $region76: #{linear_layer_forward.2} parent=66 // loop_header
                  %s593 = sphi 0, %s597
                  %p594 = scmp.ge.s32.totalorder %s593, 1
                  %s598 = sphi %s533, %s533
                  %s599 = sphi %s555, %s555
                $region77: #{linear_layer_forward.2} parent=66 // loop_header_branch
                  %596 = sbr.rel (%p594) target = $region81
                $region78: #{linear_layer_forward.2} parent=66 // loop_body
                  %v600 = vld [vmem:[%s598] sm:%s591]
                  %601 = vst [vmem:[%s599] sm:%s591] %v600
                  %v602 = vld [vmem:[%s598 + $0x4] sm:%s591]
                  %603 = vst [vmem:[%s599 + $0xc] sm:%s591] %v602
                  %v604 = vld [vmem:[%s598 + $0x8] sm:%s591]
                  %605 = vst [vmem:[%s599 + $0x18] sm:%s591] %v604
                  %v606 = vld [vmem:[%s598 + $0xc] sm:%s591]
                  %607 = vst [vmem:[%s599 + $0x24] sm:%s591] %v606
                $region79: #{linear_layer_forward.2} parent=66 // loop_footer
                  %s597 = sadd.s32 1, %s593
                $region80: #{linear_layer_forward.2} parent=66 // loop_footer_branch
                  %592 = sbr.rel target = $region76
                $region81: #{linear_layer_forward.2} parent=66 // loop_exit
                  _
              $region67: #{linear_layer_forward.2} parent=51 // pred_fallthru
                _
            $region52: #{linear_layer_forward.2} parent=47 // pred_fallthru
              _
            // Predicated region
            $region53: #{linear_layer_forward.2} parent=47 // pred_check
              _
            $region54: #{linear_layer_forward.2} parent=47 // pred_check_branch
              %561 = sbr.rel (0) target = $region56
            $region55: #{linear_layer_forward.2} parent=47 // pred_region
              %s563 = ssub.s32 16, 1
              loop: start=0, step=1, limit=1
              $region57: #{linear_layer_forward.2} parent=55 // loop_pre_header
                _
              $region58: #{linear_layer_forward.2} parent=55 // loop_header
                %s565 = sphi 0, %s569
                %p566 = scmp.ge.s32.totalorder %s565, 1
                %s570 = sphi %s533, %s533
                %s571 = sphi %s555, %s555
              $region59: #{linear_layer_forward.2} parent=55 // loop_header_branch
                %568 = sbr.rel (%p566) target = $region63
              $region60: #{linear_layer_forward.2} parent=55 // loop_body
                %v572 = vld [vmem:[%s570] sm:%s563]
                %573 = vst [vmem:[%s571] sm:%s563] %v572
                %v574 = vld [vmem:[%s570 + $0x4] sm:%s563]
                %575 = vst [vmem:[%s571 + $0xc] sm:%s563] %v574
                %v576 = vld [vmem:[%s570 + $0x8] sm:%s563]
                %577 = vst [vmem:[%s571 + $0x18] sm:%s563] %v576
                %v578 = vld [vmem:[%s570 + $0xc] sm:%s563]
                %579 = vst [vmem:[%s571 + $0x24] sm:%s563] %v578
              $region61: #{linear_layer_forward.2} parent=55 // loop_footer
                %s569 = sadd.s32 1, %s565
              $region62: #{linear_layer_forward.2} parent=55 // loop_footer_branch
                %564 = sbr.rel target = $region58
              $region63: #{linear_layer_forward.2} parent=55 // loop_exit
                _
            $region56: #{linear_layer_forward.2} parent=47 // pred_fallthru
              _
          $region48: #{linear_layer_forward.2} parent=43 // pred_fallthru
            _
          %608 = vnop
        $region44: #{linear_layer_forward.2} parent=31 // pred_fallthru
          _
        // Predicated region
        $region82: #{linear_layer_forward.2} parent=31 // pred_check
          %p609 = pneg %p166
        $region83: #{linear_layer_forward.2} parent=31 // pred_check_branch
          %611 = sbr.rel (%p609) target = $region85
        $region84: #{linear_layer_forward.2} parent=31 // pred_region
          _
        $region85: #{linear_layer_forward.2} parent=31 // pred_fallthru
          _
        // Predicated region
        $region86: #{linear_layer_forward.2} parent=31 // pred_check
          %p612 = pneg %p194
        $region87: #{linear_layer_forward.2} parent=31 // pred_check_branch
          %614 = sbr.rel (%p612) target = $region89
        $region88: #{linear_layer_forward.2} parent=31 // pred_region
          _
        $region89: #{linear_layer_forward.2} parent=31 // pred_fallthru
          _
      $region32: #{linear_layer_forward.2} parent=5 // pred_fallthru
        _
      %p615 = scmp.le.s32.totalorder 2, %s12
      // Predicated region
      $region90: #{linear_layer_forward.2} parent=5 // pred_check
        %p616 = pneg %p615
      $region91: #{linear_layer_forward.2} parent=5 // pred_check_branch
        %618 = sbr.rel (%p616) target = $region93
      $region92: #{linear_layer_forward.2} parent=5 // pred_region
        %s619 = ssub.s32 %s12, 2
        // Predicated region
        $region94: #{linear_layer_forward.2} parent=92 // pred_check
          %p620 = pneg %p144
        $region95: #{linear_layer_forward.2} parent=92 // pred_check_branch
          %622 = sbr.rel (%p620) target = $region97
        $region96: #{linear_layer_forward.2} parent=92 // pred_region
          %s623 = sand.u32 %s129, 1
          %s624 = sand.u32 %s129, 1
          %s625 = smul.addr %s624, 16
          %s626 = scalar_lea.vmem [#allocation2], %s625
        $region97: #{linear_layer_forward.2} parent=92 // pred_fallthru
          _
        // Predicated region
        $region98: #{linear_layer_forward.2} parent=92 // pred_check
          %p627 = pneg %p172
        $region99: #{linear_layer_forward.2} parent=92 // pred_check_branch
          %629 = sbr.rel (%p627) target = $region101
        $region100: #{linear_layer_forward.2} parent=92 // pred_region
          %p630 = scmp.lt.s32.totalorder %s25, 0
          %s631 = scalar_select %p630, %s25, 0
          %p632 = scmp.lt.s32.totalorder %s26, 2
          %s633 = scalar_select %p632, %s26, 2
          %s634 = smul.addr %s631, 3
          %s635 = sadd.s32 %s633, %s634
          %s636 = scalar_lea.vmem %s4, %s635
        $region101: #{linear_layer_forward.2} parent=92 // pred_fallthru
          _
        // Predicated region
        $region102: #{linear_layer_forward.2} parent=92 // pred_check
          %p637 = pneg %p200
        $region103: #{linear_layer_forward.2} parent=92 // pred_check_branch
          %639 = sbr.rel (%p637) target = $region105
        $region104: #{linear_layer_forward.2} parent=92 // pred_region
          %p640 = scmp.lt.s32.totalorder %s25, 0
          %s641 = scalar_select %p640, %s25, 0
          %p642 = scmp.lt.s32.totalorder %s26, 2
          %s643 = scalar_select %p642, %s26, 2
          %s644 = smul.addr %s641, 3
          %s645 = sadd.s32 %s643, %s644
          %s646 = scalar_lea.vmem %s5, %s645
        $region105: #{linear_layer_forward.2} parent=92 // pred_fallthru
          _
      $region93: #{linear_layer_forward.2} parent=5 // pred_fallthru
        _
    $region6: #{linear_layer_forward.2} parent=1 // loop_footer
      %s16 = sadd.s32 1, %s12
    $region7: #{linear_layer_forward.2} parent=1 // loop_footer_branch
      %11 = sbr.rel target = $region3
    $region8: #{linear_layer_forward.2} parent=1 // loop_exit
      _

// kernel: linear_layer_forward.3
$region0: #{linear_layer_forward.3}
  #allocation0 [shape = 'u32[]', space=smem, size = 0x4, offset = 0x4, fixed_abs, tag = 'smem constant byte address 0x4 - core index']
  #allocation1 [shape = 'u32[72,128]{1,0:T(1,128)}', space=vmem, size = 0x9000, scoped, tag = 'internal scratch']
  %s0 = inlined_call_operand.vmem [shape: bf16[32,384], index: 0, kind: input, shape index: {}]
  %s1 = inlined_call_operand.vmem [shape: f32[1,384], index: 1, kind: input, shape index: {}]
  %s2 = inlined_call_operand.vmem [shape: f32[1,384], index: 2, kind: input, shape index: {}]
  %s3 = inlined_call_operand.vmem [shape: f32[32,384], index: 3, kind: output, shape index: {}]
  %s4 = sld [smem:[#allocation0]]
  $region22: #{linear_layer_forward.3} parent=0
    _
  %s6 = ssub.s32 1, %s4
  %s7 = scalar_select 0, %s6, %s4
  // Predicated region
  $region2: #{linear_layer_forward.3} parent=0 // pred_check
    _
  $region3: #{linear_layer_forward.3} parent=0 // pred_check_branch
    %9 = sbr.rel (0) target = $region5
  $region4: #{linear_layer_forward.3} parent=0 // pred_region
    _
  $region5: #{linear_layer_forward.3} parent=0 // pred_fallthru
    _
  // Predicated region
  $region6: #{linear_layer_forward.3} parent=0 // pred_check
    _
  $region7: #{linear_layer_forward.3} parent=0 // pred_check_branch
    %11 = sbr.rel (0) target = $region9
  $region8: #{linear_layer_forward.3} parent=0 // pred_region
    _
  $region9: #{linear_layer_forward.3} parent=0 // pred_fallthru
    _
  // Predicated region
  $region10: #{linear_layer_forward.3} parent=0 // pred_check
    _
  $region11: #{linear_layer_forward.3} parent=0 // pred_check_branch
    %13 = sbr.rel (0) target = $region13
  $region12: #{linear_layer_forward.3} parent=0 // pred_region
    _
  $region13: #{linear_layer_forward.3} parent=0 // pred_fallthru
    _
  %v14 = vld [vmem:[%s0] sm:$0xff]
  %v15 = vld [vmem:[%s0 + $0x8] sm:$0xf]
  %v16 = vld [vmem:[%s0 + $0xc] sm:$0xff]
  %v17 = vld [vmem:[%s0 + $0x14] sm:$0xf]
  %v18 = vld [vmem:[%s0 + $0x18] sm:$0xff]
  %v19 = vld [vmem:[%s0 + $0x20] sm:$0xf]
  %v20 = vld [vmem:[%s0 + $0x24] sm:$0xff]
  %v21 = vld [vmem:[%s0 + $0x2c] sm:$0xf]
  %v22 = vunpack.c.l.bf16 %v14
  %v23 = vunpack.c.h.bf16 %v14
  %v24 = vunpack.c.l.bf16 %v15
  %v25 = vunpack.c.l.bf16 %v16
  %v26 = vunpack.c.h.bf16 %v16
  %v27 = vunpack.c.l.bf16 %v17
  %v28 = vunpack.c.l.bf16 %v18
  %v29 = vunpack.c.h.bf16 %v18
  %v30 = vunpack.c.l.bf16 %v19
  %v31 = vunpack.c.l.bf16 %v20
  %v32 = vunpack.c.h.bf16 %v20
  %v33 = vunpack.c.l.bf16 %v21
  %v34 = vld [vmem:[%s1] sm:$0x7]
  %v36 = vperm.slane %v34, 0
  %v37 = vperm.slane %v34, 1
  %v38 = vperm.slane %v34, 2
  %v42 = vmul.f32 %v22, %v36
  %v43 = vmul.f32 %v23, %v37
  %v44 = vmul.f32 %v24, %v38
  %v45 = vmul.f32 %v25, %v36
  %v46 = vmul.f32 %v26, %v37
  %v47 = vmul.f32 %v27, %v38
  %v48 = vmul.f32 %v28, %v36
  %v49 = vmul.f32 %v29, %v37
  %v50 = vmul.f32 %v30, %v38
  %v51 = vmul.f32 %v31, %v36
  %v52 = vmul.f32 %v32, %v37
  %v53 = vmul.f32 %v33, %v38
  %v54 = vld [vmem:[%s2] sm:$0x7]
  %v56 = vperm.slane %v54, 0
  %v57 = vperm.slane %v54, 1
  %v58 = vperm.slane %v54, 2
  %v62 = vadd.f32 %v42, %v56
  %v63 = vadd.f32 %v43, %v57
  %v64 = vadd.f32 %v44, %v58
  %v65 = vadd.f32 %v45, %v56
  %v66 = vadd.f32 %v46, %v57
  %v67 = vadd.f32 %v47, %v58
  %v68 = vadd.f32 %v48, %v56
  %v69 = vadd.f32 %v49, %v57
  %v70 = vadd.f32 %v50, %v58
  %v71 = vadd.f32 %v51, %v56
  %v72 = vadd.f32 %v52, %v57
  %v73 = vadd.f32 %v53, %v58
  %74 = vst [vmem:[%s3] sm:$0xff] %v62
  %75 = vst [vmem:[%s3 + $0x8] sm:$0xff] %v63
  %76 = vst [vmem:[%s3 + $0x10] sm:$0xff] %v64
  %77 = vst [vmem:[%s3 + $0x18] sm:$0xff] %v65
  %78 = vst [vmem:[%s3 + $0x20] sm:$0xff] %v66
  %79 = vst [vmem:[%s3 + $0x28] sm:$0xff] %v67
  %80 = vst [vmem:[%s3 + $0x30] sm:$0xff] %v68
  %81 = vst [vmem:[%s3 + $0x38] sm:$0xff] %v69
  %82 = vst [vmem:[%s3 + $0x40] sm:$0xff] %v70
  %83 = vst [vmem:[%s3 + $0x48] sm:$0xff] %v71
  %84 = vst [vmem:[%s3 + $0x50] sm:$0xff] %v72
  %85 = vst [vmem:[%s3 + $0x58] sm:$0xff] %v73
  // Predicated region
  $region14: #{linear_layer_forward.3} parent=0 // pred_check
    _
  $region15: #{linear_layer_forward.3} parent=0 // pred_check_branch
    %87 = sbr.rel (0) target = $region17
  $region16: #{linear_layer_forward.3} parent=0 // pred_region
    _
  $region17: #{linear_layer_forward.3} parent=0 // pred_fallthru
    _
  // Predicated region
  $region18: #{linear_layer_forward.3} parent=0 // pred_check
    _
  $region19: #{linear_layer_forward.3} parent=0 // pred_check_branch
    %89 = sbr.rel (0) target = $region21
  $region20: #{linear_layer_forward.3} parent=0 // pred_region
    _
  $region21: #{linear_layer_forward.3} parent=0 // pred_fallthru
    _

</llo_original>
